<compile_context>
chip_gen: v7x
topology: tpu7x:2x2x1
jax: 0.10.0
libtpu: 0.0.40
codegen_flags: <defaults>
</compile_context>

<pallas_src>
import jax
import jax.numpy as jnp
from jax.experimental import pallas as pl
from jax.experimental.pallas import tpu as pltpu


# ----------------------------------------------------------------------------
# Fused Pallas kernel: 3x3 conv (as im2col matmul) + bias + ReLU + flatten + FC
# One grid step == one image.
# ----------------------------------------------------------------------------
def encode_fused_kernel(patches_ref, w2d_ref, cb_ref, fcw_ref, fcb_ref, o_ref):
    # patches_ref: (9*Cin, H*W)    im2col patches of one image
    # w2d_ref:     (Cout, 9*Cin)   conv weight, OIHW flattened to (Cout, Cin*3*3)
    # cb_ref:      (Cout, 1)       conv bias
    # fcw_ref:     (Cout, H*W, D)  fc weight, rows in NCHW channel-major order
    # fcb_ref:     (1, D)          fc bias
    # o_ref:       (1, D)          latent for this image
    cout = w2d_ref.shape[0]

    # Conv as one MXU matmul -> lane-dense (Cout, H*W) accumulator (2 vregs).
    h = jnp.dot(w2d_ref[...], patches_ref[...], preferred_element_type=jnp.float32)
    h = jnp.maximum(h + cb_ref[...], 0.0)                 # bias + ReLU, all f32

    # FC: out[d] = fc_b[d] + sum_c  h[c, :] @ fcw[c, :, d]
    # Unrolled over Cout (static, 8 iters) -> 8 small MXU dots; no relayout of h.
    acc = fcb_ref[...]                                     # (1, D)
    for c in range(cout):
        acc = acc + jnp.dot(h[c:c + 1, :], fcw_ref[c],
                            preferred_element_type=jnp.float32)
    o_ref[...] = acc


def _im2col(x_nchw):
    """(N, Cin, H, W) -> (N, Cin*9, H*W) with tap index j = ci*9 + kh*3 + kw."""
    N, C, H, W = x_nchw.shape
    xp = jnp.pad(x_nchw, ((0, 0), (0, 0), (1, 1), (1, 1)))       # same padding
    taps = [xp[:, :, kh:kh + H, kw:kw + W]
            for kh in range(3) for kw in range(3)]               # 9 x (N,C,H,W)
    p = jnp.stack(taps, axis=2)                                  # (N, C, 9, H, W)
    return p.reshape(N, C * 9, H * W)


def encode(x_nchw, prep):
    """x_nchw: (N, Cin, H, W) f32 -> latent (N, D) f32 (conv->relu->flatten->fc)."""
    N, C, H, W = x_nchw.shape
    Cout, K9 = prep["w2d"].shape
    HW = H * W
    D = prep["fc_b2"].shape[-1]

    patches = _im2col(x_nchw)                                    # (N, 9*Cin, H*W)

    out = pl.pallas_call(
        encode_fused_kernel,
        out_shape=jax.ShapeDtypeStruct((N, 1, D), jnp.float32),
        grid_spec=pltpu.PrefetchScalarGridSpec(
            num_scalar_prefetch=0,
            grid=(N,),
            in_specs=[
                pl.BlockSpec((None, K9, HW), lambda n: (n, 0, 0)),   # per-image patches
                pl.BlockSpec((Cout, K9), lambda n: (0, 0)),          # conv weight (resident)
                pl.BlockSpec((Cout, 1), lambda n: (0, 0)),           # conv bias
                pl.BlockSpec((Cout, HW, D), lambda n: (0, 0, 0)),    # fc weight (resident)
                pl.BlockSpec((1, D), lambda n: (0, 0)),              # fc bias
            ],
            out_specs=pl.BlockSpec((None, 1, D), lambda n: (n, 0, 0)),
        ),
        compiler_params=pltpu.CompilerParams(
            dimension_semantics=("parallel",),   # one image per TC on v7x
        ),
    )(patches, prep["w2d"], prep["cb2"], prep["fc_w3"], prep["fc_b2"])

    return out.reshape(N, D)


encode_jit = jax.jit(encode)


def prepare_params(params):
    """One-time reshape of the frozen encoder params into kernel-friendly slabs."""
    conv_w = params["conv_w"]                       # (Cout, Cin, 3, 3)  (OIHW)
    Cout, Cin = conv_w.shape[0], conv_w.shape[1]
    fc_w = params["fc_w"]                           # (Cout*H*W, D), NCHW channel-major rows
    D = fc_w.shape[-1]
    HW = fc_w.shape[0] // Cout
    return {
        "w2d":   conv_w.reshape(Cout, Cin * 9).astype(jnp.float32),
        "cb2":   params["conv_b"].reshape(Cout, 1).astype(jnp.float32),
        "fc_w3": fc_w.reshape(Cout, HW, D).astype(jnp.float32),
        "fc_b2": params["fc_b"].reshape(1, D).astype(jnp.float32),
    }


# ----------------------------------------------------------------------------
# JAX/Pallas analogue of the PyTorch DeepDream module
# ----------------------------------------------------------------------------
class DeepDreamPallas:
    def __init__(self, starting_image, ending_image, params):
        self.W = starting_image                     # the (only) learnable parameter
        self.prep = prepare_params(params)          # frozen encoder params (pre-flattened)
        self.ending_encoding = encode_jit(ending_image, self.prep)

    def forward(self):
        return encode_jit(self.W, self.prep)

    def getWeights(self):
        return self.W                               # JAX arrays are immutable (clone/detach moot)

    def getEndingEncoding(self):
        return self.ending_encoding


if __name__ == "__main__":
    key = jax.random.PRNGKey(0)
    k_start, k_end, k_cw, k_cb, k_fw, k_fb = jax.random.split(key, 6)

    # Small shapes: batch=2, channels=4, spatial=16x16, conv-out=8, latent=32
    N, C, H, W = 2, 4, 16, 16
    COUT, D = 8, 32

    starting_image = jax.random.normal(k_start, (N, C, H, W), jnp.float32)
    ending_image = jax.random.normal(k_end, (N, C, H, W), jnp.float32)

    # Deterministic frozen "model" parameters (synthetic, PyTorch-style layouts).
    params = {
        "conv_w": jax.random.normal(k_cw, (COUT, C, 3, 3), jnp.float32) * 0.1,   # OIHW
        "conv_b": jax.random.normal(k_cb, (COUT,), jnp.float32) * 0.1,
        "fc_w":   jax.random.normal(k_fw, (COUT * H * W, D), jnp.float32) * 0.02,  # (F, D), NCHW flatten order
        "fc_b":   jax.random.normal(k_fb, (D,), jnp.float32) * 0.02,
    }

    dream = DeepDreamPallas(starting_image, ending_image, params)

    out = dream.forward()
    jax.block_until_ready(out)
    jax.block_until_ready(dream.getEndingEncoding())

    assert out.shape == (N, D) and out.dtype == jnp.float32
    assert dream.getEndingEncoding().shape == (N, D)
    print("KERNEL_OK")
</pallas_src>

<mosaic_0001>
module attributes {stable_mosaic.version = 11 : i64} {
  func.func @encode_fused_kernel(%arg0: i32, %arg1: memref<1x36x256xf32, #tpu.memory_space<vmem>>, %arg2: memref<8x36xf32, #tpu.memory_space<vmem>>, %arg3: memref<8x1xf32, #tpu.memory_space<vmem>>, %arg4: memref<8x256x32xf32, #tpu.memory_space<vmem>>, %arg5: memref<1x32xf32, #tpu.memory_space<vmem>>, %arg6: memref<1x1x32xf32, #tpu.memory_space<vmem>>) attributes {dimension_semantics = [#tpu.dimension_semantics<parallel>], iteration_bounds = array<i64: 2>, scalar_prefetch = 0 : i64, scratch_operands = 0 : i64, tpu.core_type = #tpu.core_type<tc>, window_params = [{transform_indices = @transform_0, window_bounds = array<i64: 1, 36, 256>}, {pipeline_mode = #tpu.pipeline_mode<synchronous>, transform_indices = @transform_1, window_bounds = array<i64: 8, 36>}, {pipeline_mode = #tpu.pipeline_mode<synchronous>, transform_indices = @transform_2, window_bounds = array<i64: 8, 1>}, {pipeline_mode = #tpu.pipeline_mode<synchronous>, transform_indices = @transform_3, window_bounds = array<i64: 8, 256, 32>}, {pipeline_mode = #tpu.pipeline_mode<synchronous>, transform_indices = @transform_4, window_bounds = array<i64: 1, 32>}, {transform_indices = @transform_5, window_bounds = array<i64: 1, 1, 32>}]} {
    %c0 = arith.constant 0 : index
    %c0_0 = arith.constant 0 : index
    %0 = vector.load %arg2[%c0, %c0_0] : memref<8x36xf32, #tpu.memory_space<vmem>>, vector<8x36xf32>
    %c0_1 = arith.constant 0 : index
    %c0_2 = arith.constant 0 : index
    %c0_3 = arith.constant 0 : index
    %1 = vector.load %arg1[%c0_1, %c0_2, %c0_3] : memref<1x36x256xf32, #tpu.memory_space<vmem>>, vector<1x36x256xf32>
    %2 = vector.shape_cast %1 : vector<1x36x256xf32> to vector<36x256xf32>
    %cst = arith.constant dense<0.000000e+00> : vector<8x256xf32>
    %3 = tpu.matmul %0, %2, %cst {dimension_numbers = #tpu.dot_dimension_numbers<[1], [0], [0], [1], [0, 0, 1, 1], [], []>} : vector<8x36xf32>, vector<36x256xf32>, vector<8x256xf32> -> vector<8x256xf32>
    %c0_4 = arith.constant 0 : index
    %c0_5 = arith.constant 0 : index
    %4 = vector.load %arg3[%c0_4, %c0_5] : memref<8x1xf32, #tpu.memory_space<vmem>>, vector<8x1xf32>
    %5 = vector.broadcast %4 : vector<8x1xf32> to vector<8x256xf32>
    %6 = arith.addf %3, %5 : vector<8x256xf32>
    %cst_6 = arith.constant 0.000000e+00 : f32
    %7 = vector.broadcast %cst_6 : f32 to vector<8x256xf32>
    %8 = arith.maximumf %6, %7 : vector<8x256xf32>
    %c0_7 = arith.constant 0 : index
    %c0_8 = arith.constant 0 : index
    %9 = vector.load %arg5[%c0_7, %c0_8] : memref<1x32xf32, #tpu.memory_space<vmem>>, vector<1x32xf32>
    %10 = vector.extract_strided_slice %8 {offsets = [0, 0], sizes = [1, 256], strides = [1, 1]} : vector<8x256xf32> to vector<1x256xf32>
    %c0_9 = arith.constant 0 : index
    %c0_10 = arith.constant 0 : index
    %c0_11 = arith.constant 0 : index
    %11 = vector.load %arg4[%c0_9, %c0_10, %c0_11] : memref<8x256x32xf32, #tpu.memory_space<vmem>>, vector<1x256x32xf32>
    %12 = vector.shape_cast %11 : vector<1x256x32xf32> to vector<256x32xf32>
    %cst_12 = arith.constant dense<0.000000e+00> : vector<1x32xf32>
    %13 = tpu.matmul %10, %12, %cst_12 {dimension_numbers = #tpu.dot_dimension_numbers<[1], [0], [0], [1], [0, 0, 1, 1], [], []>} : vector<1x256xf32>, vector<256x32xf32>, vector<1x32xf32> -> vector<1x32xf32>
    %14 = arith.addf %9, %13 : vector<1x32xf32>
    %15 = vector.extract_strided_slice %8 {offsets = [1, 0], sizes = [1, 256], strides = [1, 1]} : vector<8x256xf32> to vector<1x256xf32>
    %c1 = arith.constant 1 : index
    %c0_13 = arith.constant 0 : index
    %c0_14 = arith.constant 0 : index
    %16 = vector.load %arg4[%c1, %c0_13, %c0_14] : memref<8x256x32xf32, #tpu.memory_space<vmem>>, vector<1x256x32xf32>
    %17 = vector.shape_cast %16 : vector<1x256x32xf32> to vector<256x32xf32>
    %cst_15 = arith.constant dense<0.000000e+00> : vector<1x32xf32>
    %18 = tpu.matmul %15, %17, %cst_15 {dimension_numbers = #tpu.dot_dimension_numbers<[1], [0], [0], [1], [0, 0, 1, 1], [], []>} : vector<1x256xf32>, vector<256x32xf32>, vector<1x32xf32> -> vector<1x32xf32>
    %19 = arith.addf %14, %18 : vector<1x32xf32>
    %20 = vector.extract_strided_slice %8 {offsets = [2, 0], sizes = [1, 256], strides = [1, 1]} : vector<8x256xf32> to vector<1x256xf32>
    %c2 = arith.constant 2 : index
    %c0_16 = arith.constant 0 : index
    %c0_17 = arith.constant 0 : index
    %21 = vector.load %arg4[%c2, %c0_16, %c0_17] : memref<8x256x32xf32, #tpu.memory_space<vmem>>, vector<1x256x32xf32>
    %22 = vector.shape_cast %21 : vector<1x256x32xf32> to vector<256x32xf32>
    %cst_18 = arith.constant dense<0.000000e+00> : vector<1x32xf32>
    %23 = tpu.matmul %20, %22, %cst_18 {dimension_numbers = #tpu.dot_dimension_numbers<[1], [0], [0], [1], [0, 0, 1, 1], [], []>} : vector<1x256xf32>, vector<256x32xf32>, vector<1x32xf32> -> vector<1x32xf32>
    %24 = arith.addf %19, %23 : vector<1x32xf32>
    %25 = vector.extract_strided_slice %8 {offsets = [3, 0], sizes = [1, 256], strides = [1, 1]} : vector<8x256xf32> to vector<1x256xf32>
    %c3 = arith.constant 3 : index
    %c0_19 = arith.constant 0 : index
    %c0_20 = arith.constant 0 : index
    %26 = vector.load %arg4[%c3, %c0_19, %c0_20] : memref<8x256x32xf32, #tpu.memory_space<vmem>>, vector<1x256x32xf32>
    %27 = vector.shape_cast %26 : vector<1x256x32xf32> to vector<256x32xf32>
    %cst_21 = arith.constant dense<0.000000e+00> : vector<1x32xf32>
    %28 = tpu.matmul %25, %27, %cst_21 {dimension_numbers = #tpu.dot_dimension_numbers<[1], [0], [0], [1], [0, 0, 1, 1], [], []>} : vector<1x256xf32>, vector<256x32xf32>, vector<1x32xf32> -> vector<1x32xf32>
    %29 = arith.addf %24, %28 : vector<1x32xf32>
    %30 = vector.extract_strided_slice %8 {offsets = [4, 0], sizes = [1, 256], strides = [1, 1]} : vector<8x256xf32> to vector<1x256xf32>
    %c4 = arith.constant 4 : index
    %c0_22 = arith.constant 0 : index
    %c0_23 = arith.constant 0 : index
    %31 = vector.load %arg4[%c4, %c0_22, %c0_23] : memref<8x256x32xf32, #tpu.memory_space<vmem>>, vector<1x256x32xf32>
    %32 = vector.shape_cast %31 : vector<1x256x32xf32> to vector<256x32xf32>
    %cst_24 = arith.constant dense<0.000000e+00> : vector<1x32xf32>
    %33 = tpu.matmul %30, %32, %cst_24 {dimension_numbers = #tpu.dot_dimension_numbers<[1], [0], [0], [1], [0, 0, 1, 1], [], []>} : vector<1x256xf32>, vector<256x32xf32>, vector<1x32xf32> -> vector<1x32xf32>
    %34 = arith.addf %29, %33 : vector<1x32xf32>
    %35 = vector.extract_strided_slice %8 {offsets = [5, 0], sizes = [1, 256], strides = [1, 1]} : vector<8x256xf32> to vector<1x256xf32>
    %c5 = arith.constant 5 : index
    %c0_25 = arith.constant 0 : index
    %c0_26 = arith.constant 0 : index
    %36 = vector.load %arg4[%c5, %c0_25, %c0_26] : memref<8x256x32xf32, #tpu.memory_space<vmem>>, vector<1x256x32xf32>
    %37 = vector.shape_cast %36 : vector<1x256x32xf32> to vector<256x32xf32>
    %cst_27 = arith.constant dense<0.000000e+00> : vector<1x32xf32>
    %38 = tpu.matmul %35, %37, %cst_27 {dimension_numbers = #tpu.dot_dimension_numbers<[1], [0], [0], [1], [0, 0, 1, 1], [], []>} : vector<1x256xf32>, vector<256x32xf32>, vector<1x32xf32> -> vector<1x32xf32>
    %39 = arith.addf %34, %38 : vector<1x32xf32>
    %40 = vector.extract_strided_slice %8 {offsets = [6, 0], sizes = [1, 256], strides = [1, 1]} : vector<8x256xf32> to vector<1x256xf32>
    %c6 = arith.constant 6 : index
    %c0_28 = arith.constant 0 : index
    %c0_29 = arith.constant 0 : index
    %41 = vector.load %arg4[%c6, %c0_28, %c0_29] : memref<8x256x32xf32, #tpu.memory_space<vmem>>, vector<1x256x32xf32>
    %42 = vector.shape_cast %41 : vector<1x256x32xf32> to vector<256x32xf32>
    %cst_30 = arith.constant dense<0.000000e+00> : vector<1x32xf32>
    %43 = tpu.matmul %40, %42, %cst_30 {dimension_numbers = #tpu.dot_dimension_numbers<[1], [0], [0], [1], [0, 0, 1, 1], [], []>} : vector<1x256xf32>, vector<256x32xf32>, vector<1x32xf32> -> vector<1x32xf32>
    %44 = arith.addf %39, %43 : vector<1x32xf32>
    %45 = vector.extract_strided_slice %8 {offsets = [7, 0], sizes = [1, 256], strides = [1, 1]} : vector<8x256xf32> to vector<1x256xf32>
    %c7 = arith.constant 7 : index
    %c0_31 = arith.constant 0 : index
    %c0_32 = arith.constant 0 : index
    %46 = vector.load %arg4[%c7, %c0_31, %c0_32] : memref<8x256x32xf32, #tpu.memory_space<vmem>>, vector<1x256x32xf32>
    %47 = vector.shape_cast %46 : vector<1x256x32xf32> to vector<256x32xf32>
    %cst_33 = arith.constant dense<0.000000e+00> : vector<1x32xf32>
    %48 = tpu.matmul %45, %47, %cst_33 {dimension_numbers = #tpu.dot_dimension_numbers<[1], [0], [0], [1], [0, 0, 1, 1], [], []>} : vector<1x256xf32>, vector<256x32xf32>, vector<1x32xf32> -> vector<1x32xf32>
    %49 = arith.addf %44, %48 : vector<1x32xf32>
    %c0_34 = arith.constant 0 : index
    %c0_35 = arith.constant 0 : index
    %c0_36 = arith.constant 0 : index
    %50 = vector.load %arg6[%c0_34, %c0_35, %c0_36] : memref<1x1x32xf32, #tpu.memory_space<vmem>>, vector<1x1x32xf32>
    %51 = vector.shape_cast %50 : vector<1x1x32xf32> to vector<1x32xf32>
    %52 = vector.shape_cast %49 : vector<1x32xf32> to vector<1x1x32xf32>
    tpu.vector_store %arg6[%c0_34, %c0_35, %c0_36], %52 {strides = array<i32>} : memref<1x1x32xf32, #tpu.memory_space<vmem>>, vector<1x1x32xf32>,
    return
  }
  func.func @transform_0(%arg0: i32) -> (i32, i32, i32) {
    %c0_i32 = arith.constant 0 : i32
    %c0_i32_0 = arith.constant 0 : i32
    %c0_i32_1 = arith.constant 0 : i32
    return %arg0, %c0_i32, %c0_i32_0 : i32, i32, i32
  }
  func.func @transform_1(%arg0: i32) -> (i32, i32) {
    %c0_i32 = arith.constant 0 : i32
    %c0_i32_0 = arith.constant 0 : i32
    %c0_i32_1 = arith.constant 0 : i32
    return %c0_i32, %c0_i32_0 : i32, i32
  }
  func.func @transform_2(%arg0: i32) -> (i32, i32) {
    %c0_i32 = arith.constant 0 : i32
    %c0_i32_0 = arith.constant 0 : i32
    %c0_i32_1 = arith.constant 0 : i32
    return %c0_i32, %c0_i32_0 : i32, i32
  }
  func.func @transform_3(%arg0: i32) -> (i32, i32, i32) {
    %c0_i32 = arith.constant 0 : i32
    %c0_i32_0 = arith.constant 0 : i32
    %c0_i32_1 = arith.constant 0 : i32
    %c0_i32_2 = arith.constant 0 : i32
    return %c0_i32, %c0_i32_0, %c0_i32_1 : i32, i32, i32
  }
  func.func @transform_4(%arg0: i32) -> (i32, i32) {
    %c0_i32 = arith.constant 0 : i32
    %c0_i32_0 = arith.constant 0 : i32
    %c0_i32_1 = arith.constant 0 : i32
    return %c0_i32, %c0_i32_0 : i32, i32
  }
  func.func @transform_5(%arg0: i32) -> (i32, i32, i32) {
    %c0_i32 = arith.constant 0 : i32
    %c0_i32_0 = arith.constant 0 : i32
    %c0_i32_1 = arith.constant 0 : i32
    return %arg0, %c0_i32, %c0_i32_0 : i32, i32, i32
  }
}

</mosaic_0001>

<llo_original>
// kernel: encode.1
$region0: #{encode.1}
  #allocation0 [shape = 'u32[]', space=smem, size = 0x4, offset = 0x4, fixed_abs, tag = 'smem constant byte address 0x4 - core index']
  #allocation1 [shape = 'u32[144,128]{1,0:T(1,128)}', space=vmem, size = 0x12000, scoped, tag = 'internal scratch']
  %s0 = inlined_call_operand.vmem [shape: f32[2,36,256], index: 0, kind: input, shape index: {}]
  %s1 = inlined_call_operand.vmem [shape: f32[8,36], index: 1, kind: input, shape index: {}]
  %s2 = inlined_call_operand.vmem [shape: f32[8,1], index: 2, kind: input, shape index: {}]
  %s3 = inlined_call_operand.vmem [shape: f32[8,256,32], index: 3, kind: input, shape index: {}]
  %s4 = inlined_call_operand.vmem [shape: f32[1,32], index: 4, kind: input, shape index: {}]
  %s5 = inlined_call_operand.hbm [shape: f32[2,1,32], index: 5, kind: output, shape index: {}]
  %s6 = sld [smem:[#allocation0]]
  $region53: #{encode.1} parent=0
    _
  %s8 = ssub.s32 1, %s6
  %s9 = scalar_select 0, %s8, %s6
  $region1: #{encode.1} parent=0
    #allocation2 [shape = 'u8[1024]{0}', space=vmem, size = 0x400, scoped, tag = 'output window, operand 0']
    #allocation3 [shape = 's32[2]{0}', space=sflag, size = 0x8, scoped, tag = 'scoped memory for encode.1']
    %10 = vsyncpa [#allocation3], 0
    %s11 = scalar_lea.sflag [#allocation3], 1
    %12 = vsyncpa %s11, 0
    loop: start=0, step=1, limit=4
    $region2: #{encode.1} parent=1 // loop_pre_header
      _
    $region3: #{encode.1} parent=1 // loop_header
      %s14 = sphi 0, %s18
      %p15 = scmp.ge.s32.totalorder %s14, 4
      %s24 = sphi 0, %s26
      %s27 = sphi 0, %s24
      %s28 = sphi 0, %s27
      %s44 = sphi 0, %s28
      %s48 = sphi 0, %s48
      %s50 = sphi 0, %s48
      %s51 = sphi 0, %s50
      %s65 = sphi 0, %s51
      %s69 = sphi 0, %s69
      %s71 = sphi 0, %s69
      %s72 = sphi 0, %s71
      %s86 = sphi 0, %s72
      %s90 = sphi 0, %s90
      %s92 = sphi 0, %s90
      %s93 = sphi 0, %s92
      %s107 = sphi 0, %s93
      %s111 = sphi 0, %s111
      %s113 = sphi 0, %s111
      %s114 = sphi 0, %s113
      %s128 = sphi 0, %s114
      %s134 = sphi 0, %s136
      %s137 = sphi 0, %s134
      %s138 = sphi 0, %s137
      %s154 = sphi 0, %s138
    $region4: #{encode.1} parent=1 // loop_header_branch
      %17 = sbr.rel (%p15) target = $region8
    $region5: #{encode.1} parent=1 // loop_body
      %s19 = ssub.s32 %s14, 1
      %s20 = ssub.s32 %s14, 2
      %s21 = sadd.s32 %s14, 1
      %s22 = ssub.s32 %s14, %s21
      %p23 = scmp.eq.s32.totalorder %s22, 0
      %s25 = sadd.s32 %s24, 1
      %s26 = scalar_select %p23, %s24, %s25
      %p29 = pneg %p23
      %p30 = scmp.eq.s32.totalorder %s14, 1
      %p31 = por %p29, %p30
      %p32 = scmp.ne.s32.totalorder %s24, %s27
      %p33 = scmp.eq.s32.totalorder %s14, 0
      %p34 = por %p32, %p33
      %p35 = scmp.ne.s32.totalorder %s24, %s27
      %p36 = scmp.eq.s32.totalorder %s19, 1
      %p37 = por %p35, %p36
      %p38 = scmp.ne.s32.totalorder %s27, %s28
      %p39 = scmp.eq.s32.totalorder %s19, 0
      %p40 = por %p38, %p39
      %p41 = scmp.ne.s32.totalorder %s27, %s28
      %p42 = scmp.eq.s32.totalorder %s20, 1
      %p43 = por %p41, %p42
      %p45 = scmp.ne.s32.totalorder %s28, %s44
      %p46 = scmp.eq.s32.totalorder %s20, 0
      %p47 = por %p45, %p46
      %s49 = sadd.s32 %s48, 1
      %p52 = scmp.eq.s32.totalorder %s14, 1
      %p53 = scmp.ne.s32.totalorder %s48, %s50
      %p54 = scmp.eq.s32.totalorder %s14, 0
      %p55 = por %p53, %p54
      %p56 = scmp.ne.s32.totalorder %s48, %s50
      %p57 = scmp.eq.s32.totalorder %s19, 1
      %p58 = por %p56, %p57
      %p59 = scmp.ne.s32.totalorder %s50, %s51
      %p60 = scmp.eq.s32.totalorder %s19, 0
      %p61 = por %p59, %p60
      %p62 = scmp.ne.s32.totalorder %s50, %s51
      %p63 = scmp.eq.s32.totalorder %s20, 1
      %p64 = por %p62, %p63
      %p66 = scmp.ne.s32.totalorder %s51, %s65
      %p67 = scmp.eq.s32.totalorder %s20, 0
      %p68 = por %p66, %p67
      %s70 = sadd.s32 %s69, 1
      %p73 = scmp.eq.s32.totalorder %s14, 1
      %p74 = scmp.ne.s32.totalorder %s69, %s71
      %p75 = scmp.eq.s32.totalorder %s14, 0
      %p76 = por %p74, %p75
      %p77 = scmp.ne.s32.totalorder %s69, %s71
      %p78 = scmp.eq.s32.totalorder %s19, 1
      %p79 = por %p77, %p78
      %p80 = scmp.ne.s32.totalorder %s71, %s72
      %p81 = scmp.eq.s32.totalorder %s19, 0
      %p82 = por %p80, %p81
      %p83 = scmp.ne.s32.totalorder %s71, %s72
      %p84 = scmp.eq.s32.totalorder %s20, 1
      %p85 = por %p83, %p84
      %p87 = scmp.ne.s32.totalorder %s72, %s86
      %p88 = scmp.eq.s32.totalorder %s20, 0
      %p89 = por %p87, %p88
      %s91 = sadd.s32 %s90, 1
      %p94 = scmp.eq.s32.totalorder %s14, 1
      %p95 = scmp.ne.s32.totalorder %s90, %s92
      %p96 = scmp.eq.s32.totalorder %s14, 0
      %p97 = por %p95, %p96
      %p98 = scmp.ne.s32.totalorder %s90, %s92
      %p99 = scmp.eq.s32.totalorder %s19, 1
      %p100 = por %p98, %p99
      %p101 = scmp.ne.s32.totalorder %s92, %s93
      %p102 = scmp.eq.s32.totalorder %s19, 0
      %p103 = por %p101, %p102
      %p104 = scmp.ne.s32.totalorder %s92, %s93
      %p105 = scmp.eq.s32.totalorder %s20, 1
      %p106 = por %p104, %p105
      %p108 = scmp.ne.s32.totalorder %s93, %s107
      %p109 = scmp.eq.s32.totalorder %s20, 0
      %p110 = por %p108, %p109
      %s112 = sadd.s32 %s111, 1
      %p115 = scmp.eq.s32.totalorder %s14, 1
      %p116 = scmp.ne.s32.totalorder %s111, %s113
      %p117 = scmp.eq.s32.totalorder %s14, 0
      %p118 = por %p116, %p117
      %p119 = scmp.ne.s32.totalorder %s111, %s113
      %p120 = scmp.eq.s32.totalorder %s19, 1
      %p121 = por %p119, %p120
      %p122 = scmp.ne.s32.totalorder %s113, %s114
      %p123 = scmp.eq.s32.totalorder %s19, 0
      %p124 = por %p122, %p123
      %p125 = scmp.ne.s32.totalorder %s113, %s114
      %p126 = scmp.eq.s32.totalorder %s20, 1
      %p127 = por %p125, %p126
      %p129 = scmp.ne.s32.totalorder %s114, %s128
      %p130 = scmp.eq.s32.totalorder %s20, 0
      %p131 = por %p129, %p130
      %s132 = ssub.s32 %s14, %s21
      %p133 = scmp.eq.s32.totalorder %s132, 0
      %s135 = sadd.s32 %s134, 1
      %s136 = scalar_select %p133, %s134, %s135
      %p139 = pneg %p133
      %p140 = scmp.eq.s32.totalorder %s14, 1
      %p141 = por %p139, %p140
      %p142 = scmp.ne.s32.totalorder %s134, %s137
      %p143 = scmp.eq.s32.totalorder %s14, 0
      %p144 = por %p142, %p143
      %p145 = scmp.ne.s32.totalorder %s134, %s137
      %p146 = scmp.eq.s32.totalorder %s19, 1
      %p147 = por %p145, %p146
      %p148 = scmp.ne.s32.totalorder %s137, %s138
      %p149 = scmp.eq.s32.totalorder %s19, 0
      %p150 = por %p148, %p149
      %p151 = scmp.ne.s32.totalorder %s137, %s138
      %p152 = scmp.eq.s32.totalorder %s20, 1
      %p153 = por %p151, %p152
      %p155 = scmp.ne.s32.totalorder %s138, %s154
      %p156 = scmp.eq.s32.totalorder %s20, 0
      %p157 = por %p155, %p156
      %p158 = scmp.le.s32.totalorder 1, %s14
      %p159 = scmp.lt.s32.totalorder %s14, 3
      %p160 = pnand %p158, %p159
      %p161 = pneg %p160
      // Predicated region
      $region9: #{encode.1} parent=5 // pred_check
        _
      $region10: #{encode.1} parent=5 // pred_check_branch
        %163 = sbr.rel (%p160) target = $region12
      $region11: #{encode.1} parent=5 // pred_region
        %s164 = ssub.s32 %s14, 1
        // Predicated region
        $region13: #{encode.1} parent=11 // pred_check
          %p165 = pneg %p61
        $region14: #{encode.1} parent=11 // pred_check_branch
          %167 = sbr.rel (%p165) target = $region16
        $region15: #{encode.1} parent=11 // pred_region
          _
        $region16: #{encode.1} parent=11 // pred_fallthru
          _
        // Predicated region
        $region17: #{encode.1} parent=11 // pred_check
          %p168 = pneg %p82
        $region18: #{encode.1} parent=11 // pred_check_branch
          %170 = sbr.rel (%p168) target = $region20
        $region19: #{encode.1} parent=11 // pred_region
          _
        $region20: #{encode.1} parent=11 // pred_fallthru
          _
        // Predicated region
        $region21: #{encode.1} parent=11 // pred_check
          %p171 = pneg %p103
        $region22: #{encode.1} parent=11 // pred_check_branch
          %173 = sbr.rel (%p171) target = $region24
        $region23: #{encode.1} parent=11 // pred_region
          _
        $region24: #{encode.1} parent=11 // pred_fallthru
          _
        // Predicated region
        $region25: #{encode.1} parent=11 // pred_check
          %p174 = pneg %p124
        $region26: #{encode.1} parent=11 // pred_check_branch
          %176 = sbr.rel (%p174) target = $region28
        $region27: #{encode.1} parent=11 // pred_region
          _
        $region28: #{encode.1} parent=11 // pred_fallthru
          _
      $region12: #{encode.1} parent=5 // pred_fallthru
        _
      %p177 = scmp.lt.s32.totalorder %s14, 2
      // Predicated region
      $region29: #{encode.1} parent=5 // pred_check
        %p178 = pneg %p177
      $region30: #{encode.1} parent=5 // pred_check_branch
        %180 = sbr.rel (%p178) target = $region32
      $region31: #{encode.1} parent=5 // pred_region
        // Predicated region
        $region33: #{encode.1} parent=31 // pred_check
          %p181 = pneg %p34
        $region34: #{encode.1} parent=31 // pred_check_branch
          %183 = sbr.rel (%p181) target = $region36
        $region35: #{encode.1} parent=31 // pred_region
          %p184 = scmp.lt.s32.totalorder %s14, 1
          %s185 = scalar_select %p184, %s14, 1
          %s186 = smul.addr %s185, 10
          %s187 = smul.addr %s186, 8
          %s188 = scalar_lea.vmem %s0, %s187
        $region36: #{encode.1} parent=31 // pred_fallthru
          _
      $region32: #{encode.1} parent=5 // pred_fallthru
        _
      %p189 = scmp.le.s32.totalorder 1, %s14
      %p190 = scmp.lt.s32.totalorder %s14, 3
      %p191 = pnand %p189, %p190
      %p192 = pneg %p191
      // Predicated region
      $region37: #{encode.1} parent=5 // pred_check
        _
      $region38: #{encode.1} parent=5 // pred_check_branch
        %194 = sbr.rel (%p191) target = $region40
      $region39: #{encode.1} parent=5 // pred_region
        %s195 = ssub.s32 %s14, 1
        %p196 = scmp.lt.s32.totalorder %s19, 1
        %s197 = scalar_select %p196, %s19, 1
        %s198 = smul.addr %s197, 10
        %s199 = smul.addr %s198, 8
        %s200 = scalar_lea.vmem %s0, %s199
        %p201 = pneg %p40
        %p202 = pneg %p37
        %p203 = pneg %p61
        %p204 = pneg %p58
        %p205 = pneg %p82
        %p206 = pneg %p79
        %p207 = pneg %p103
        %p208 = pneg %p100
        %p209 = pneg %p124
        %p210 = pneg %p121
        %p211 = pneg %p150
        %p212 = pneg %p147
        %s213 = sand.u32 %s137, 1
        %s214 = scalar_lea.sflag [#allocation3], %s213
        %s215 = sand.u32 %s137, 1
        %s216 = scalar_lea.vmem [#allocation2], %s215
        %p217 = scmp.lt.s32.totalorder %s19, 1
        %s218 = scalar_select %p217, %s19, 1
        %s219 = smul.addr %s218, 10
        %s220 = smul.addr %s219, 8
        %s221 = scalar_lea.vmem %s0, %s220
        %v222 = vld [vmem:[%s1] sm:$0xff]
        %v223 = vld [vmem:[%s221] sm:$0xff]
        %v224 = vld [vmem:[%s221 + $0x8] sm:$0xff]
        %v225 = vld [vmem:[%s221 + $0x10] sm:$0xff]
        %v226 = vld [vmem:[%s221 + $0x18] sm:$0xff]
        %v227 = vld [vmem:[%s221 + $0x20] sm:$0xff]
        %v228 = vld [vmem:[%s221 + $0x28] sm:$0xff]
        %v229 = vld [vmem:[%s221 + $0x30] sm:$0xff]
        %v230 = vld [vmem:[%s221 + $0x38] sm:$0xff]
        %v231 = vld [vmem:[%s221 + $0x40] sm:$0xf]
        %v232 = vld [vmem:[%s221 + $0x48] sm:$0xf]
        %v233 = vld [vmem:[%s2] sm:$0xff]
        %235 = vset.pattern.permute.xlu0 0
        %236 = vperm.xlu0 %235, %v233
        %v237 = vpop.permute.xlu0 %236
        %vm239 = vcmask 293888
        %v241 = vsel %vm239, %v222, 0
        %vm243 = vcmask 1043456
        %v245 = vsel %vm243, %v231, 0
        %v248 = vsel %vm243, %v232, 0
        %250 = vmatprep.subr.mxu0 %v224
        %251 = vmatpush1.msra.mxu0 %v223
        %252 = vmatprep.subr.mxu0 %v226
        %253 = vmatpush1.msra.mxu0 %v225
        %254 = vmatprep.subr.mxu0 %v228
        %255 = vmatpush1.msra.mxu0 %v227
        %256 = vmatprep.subr.mxu0 %v230
        %257 = vmatpush1.msra.mxu0 %v229
        %258 = vmatprep.subr.mxu0 %v248
        %259 = vmatpush1.msra.mxu0 %v245
        %260 = vmatprep.subr.mxu0 0.0
        %261 = vmatpush1.msra.mxu0 0.0
        %262 = vmatprep.subr.mxu0 0.0
        %263 = vmatpush1.msra.mxu0 0.0
        %264 = vmatprep.subr.mxu0 0.0
        %265 = vmatpush1.msra.mxu0 0.0
        %266 = vmatprep.subr.mxu0 0.0
        %267 = vmatpush1.msra.mxu0 0.0
        %268 = vmatprep.subr.mxu0 0.0
        %269 = vmatpush1.msra.mxu0 0.0
        %270 = vmatprep.subr.mxu0 0.0
        %271 = vmatpush1.msra.mxu0 0.0
        %272 = vmatprep.subr.mxu0 0.0
        %273 = vmatpush1.msra.mxu0 0.0
        %274 = vmatprep.subr.mxu0 0.0
        %275 = vmatpush1.msra.mxu0 0.0
        %276 = vmatprep.subr.mxu0 0.0
        %277 = vmatpush1.msra.mxu0 0.0
        %278 = vmatprep.subr.mxu0 0.0
        %279 = vmatpush1.msra.mxu0 0.0
        %280 = vmatprep.subr.mxu0 0.0
        %281 = vmatpush1.msra.mxu0 0.0
        %282 = vmatprep.subr.mxu0 0.0
        %283 = vmatpush1.msra.mxu0 0.0
        %284 = vmatprep.subr.mxu0 0.0
        %285 = vmatpush1.msra.mxu0 0.0
        %286 = vmatprep.subr.mxu0 0.0
        %287 = vmatpush1.msra.mxu0 0.0
        %288 = vmatprep.subr.mxu0 0.0
        %289 = vmatpush1.msra.mxu0 0.0
        %290 = vmatprep.subr.mxu0 0.0
        %291 = vmatpush1.msra.mxu0 0.0
        %292 = vmatprep.subr.mxu0 0.0
        %293 = vmatpush1.msra.mxu0 0.0
        %294 = vmatprep.subr.mxu0 0.0
        %295 = vmatpush1.msra.mxu0 0.0
        %296 = vmatprep.subr.mxu0 0.0
        %297 = vmatpush1.msra.mxu0 0.0
        %298 = vmatprep.subr.mxu0 0.0
        %299 = vmatpush1.msra.mxu0 0.0
        %300 = vmatprep.subr.mxu0 0.0
        %301 = vmatpush1.msra.mxu0 0.0
        %302 = vmatprep.subr.mxu0 0.0
        %303 = vmatpush1.msra.mxu0 0.0
        %304 = vmatprep.subr.mxu0 0.0
        %305 = vmatpush1.msra.mxu0 0.0
        %306 = vmatprep.subr.mxu0 0.0
        %307 = vmatpush1.msra.mxu0 0.0
        %308 = vmatprep.subr.mxu0 0.0
        %309 = vmatpush1.msra.mxu0 0.0
        %310 = vmatprep.subr.mxu0 0.0
        %311 = vmatpush1.msra.mxu0 0.0
        %312 = vmatprep.subr.mxu0 0.0
        %313 = vmatpush1.msra.mxu0 0.0
        %314 = vmatprep.mubr.f32.mxu0 0.0
        %315 = vmatmul.mubr.f32.gmra.mrb[0].mxu0 %v241
        %v316 = vpop.f32.mrb[0].mxu0
        %v317 = vadd.f32 %v237, %v316
        %v318 = vpop.f32.mrb[0].mxu0
        %v319 = vadd.f32 %v237, %v318
        %320 = vdwg.mxu0
        %v321 = vmax.f32 %v317, 0.0
        %v322 = vmax.f32 %v319, 0.0
        %v323 = vld [vmem:[%s4] sm:$0x1]
        %v324 = vld [vmem:[%s3] sm:$0xff]
        %v325 = vld [vmem:[%s3 + $0x8] sm:$0xff]
        %v326 = vld [vmem:[%s3 + $0x10] sm:$0xff]
        %v327 = vld [vmem:[%s3 + $0x18] sm:$0xff]
        %v328 = vld [vmem:[%s3 + $0x20] sm:$0xff]
        %v329 = vld [vmem:[%s3 + $0x28] sm:$0xff]
        %v330 = vld [vmem:[%s3 + $0x30] sm:$0xff]
        %v331 = vld [vmem:[%s3 + $0x38] sm:$0xff]
        %v332 = vld [vmem:[%s3 + $0x40] sm:$0xff]
        %v333 = vld [vmem:[%s3 + $0x48] sm:$0xff]
        %v334 = vld [vmem:[%s3 + $0x50] sm:$0xff]
        %v335 = vld [vmem:[%s3 + $0x58] sm:$0xff]
        %v336 = vld [vmem:[%s3 + $0x60] sm:$0xff]
        %v337 = vld [vmem:[%s3 + $0x68] sm:$0xff]
        %v338 = vld [vmem:[%s3 + $0x70] sm:$0xff]
        %v339 = vld [vmem:[%s3 + $0x78] sm:$0xff]
        %v340 = vld [vmem:[%s3 + $0x80] sm:$0xff]
        %v341 = vld [vmem:[%s3 + $0x88] sm:$0xff]
        %v342 = vld [vmem:[%s3 + $0x90] sm:$0xff]
        %v343 = vld [vmem:[%s3 + $0x98] sm:$0xff]
        %v344 = vld [vmem:[%s3 + $0xa0] sm:$0xff]
        %v345 = vld [vmem:[%s3 + $0xa8] sm:$0xff]
        %v346 = vld [vmem:[%s3 + $0xb0] sm:$0xff]
        %v347 = vld [vmem:[%s3 + $0xb8] sm:$0xff]
        %v348 = vld [vmem:[%s3 + $0xc0] sm:$0xff]
        %v349 = vld [vmem:[%s3 + $0xc8] sm:$0xff]
        %v350 = vld [vmem:[%s3 + $0xd0] sm:$0xff]
        %v351 = vld [vmem:[%s3 + $0xd8] sm:$0xff]
        %v352 = vld [vmem:[%s3 + $0xe0] sm:$0xff]
        %v353 = vld [vmem:[%s3 + $0xe8] sm:$0xff]
        %v354 = vld [vmem:[%s3 + $0xf0] sm:$0xff]
        %v355 = vld [vmem:[%s3 + $0xf8] sm:$0xff]
        %356 = vmatprep.subr.mxu0 0.0
        %357 = vmatpush1.msra.mxu0 %v324
        %358 = vmatprep.subr.mxu0 0.0
        %359 = vmatpush1.msra.mxu0 %v325
        %360 = vmatprep.subr.mxu0 0.0
        %361 = vmatpush1.msra.mxu0 %v326
        %362 = vmatprep.subr.mxu0 0.0
        %363 = vmatpush1.msra.mxu0 %v327
        %364 = vmatprep.subr.mxu0 0.0
        %365 = vmatpush1.msra.mxu0 %v328
        %366 = vmatprep.subr.mxu0 0.0
        %367 = vmatpush1.msra.mxu0 %v329
        %368 = vmatprep.subr.mxu0 0.0
        %369 = vmatpush1.msra.mxu0 %v330
        %370 = vmatprep.subr.mxu0 0.0
        %371 = vmatpush1.msra.mxu0 %v331
        %372 = vmatprep.subr.mxu0 0.0
        %373 = vmatpush1.msra.mxu0 %v332
        %374 = vmatprep.subr.mxu0 0.0
        %375 = vmatpush1.msra.mxu0 %v333
        %376 = vmatprep.subr.mxu0 0.0
        %377 = vmatpush1.msra.mxu0 %v334
        %378 = vmatprep.subr.mxu0 0.0
        %379 = vmatpush1.msra.mxu0 %v335
        %380 = vmatprep.subr.mxu0 0.0
        %381 = vmatpush1.msra.mxu0 %v336
        %382 = vmatprep.subr.mxu0 0.0
        %383 = vmatpush1.msra.mxu0 %v337
        %384 = vmatprep.subr.mxu0 0.0
        %385 = vmatpush1.msra.mxu0 %v338
        %386 = vmatprep.subr.mxu0 0.0
        %387 = vmatpush1.msra.mxu0 %v339
        %388 = vmatprep.subr.mxu0 0.0
        %389 = vmatpush1.msra.mxu0 %v340
        %390 = vmatprep.subr.mxu0 0.0
        %391 = vmatpush1.msra.mxu0 %v341
        %392 = vmatprep.subr.mxu0 0.0
        %393 = vmatpush1.msra.mxu0 %v342
        %394 = vmatprep.subr.mxu0 0.0
        %395 = vmatpush1.msra.mxu0 %v343
        %396 = vmatprep.subr.mxu0 0.0
        %397 = vmatpush1.msra.mxu0 %v344
        %398 = vmatprep.subr.mxu0 0.0
        %399 = vmatpush1.msra.mxu0 %v345
        %400 = vmatprep.subr.mxu0 0.0
        %401 = vmatpush1.msra.mxu0 %v346
        %402 = vmatprep.subr.mxu0 0.0
        %403 = vmatpush1.msra.mxu0 %v347
        %404 = vmatprep.subr.mxu0 0.0
        %405 = vmatpush1.msra.mxu0 %v348
        %406 = vmatprep.subr.mxu0 0.0
        %407 = vmatpush1.msra.mxu0 %v349
        %408 = vmatprep.subr.mxu0 0.0
        %409 = vmatpush1.msra.mxu0 %v350
        %410 = vmatprep.subr.mxu0 0.0
        %411 = vmatpush1.msra.mxu0 %v351
        %412 = vmatprep.subr.mxu0 0.0
        %413 = vmatpush1.msra.mxu0 %v352
        %414 = vmatprep.subr.mxu0 0.0
        %415 = vmatpush1.msra.mxu0 %v353
        %416 = vmatprep.subr.mxu0 0.0
        %417 = vmatpush1.msra.mxu0 %v354
        %418 = vmatprep.subr.mxu0 0.0
        %419 = vmatpush1.msra.mxu0 %v355
        %420 = vmatprep.mubr.f32.mxu0 %v322
        %421 = vmatmul.mubr.f32.gmra.mrb[0].mxu0 %v321
        %v422 = vpop.f32.mrb[0].mxu0
        %v423 = vadd.f32 0.0, %v422
        %v424 = vpop.f32.mrb[0].mxu0
        %425 = vdwg.mxu0
        %v426 = vadd.f32 %v323, %v423
        %s427 = scalar_lea.vmem %s3, 256
        %v428 = vld [vmem:[%s427] sm:$0xff]
        %v429 = vld [vmem:[%s427 + $0x8] sm:$0xff]
        %v430 = vld [vmem:[%s427 + $0x10] sm:$0xff]
        %v431 = vld [vmem:[%s427 + $0x18] sm:$0xff]
        %v432 = vld [vmem:[%s427 + $0x20] sm:$0xff]
        %v433 = vld [vmem:[%s427 + $0x28] sm:$0xff]
        %v434 = vld [vmem:[%s427 + $0x30] sm:$0xff]
        %v435 = vld [vmem:[%s427 + $0x38] sm:$0xff]
        %v436 = vld [vmem:[%s427 + $0x40] sm:$0xff]
        %v437 = vld [vmem:[%s427 + $0x48] sm:$0xff]
        %v438 = vld [vmem:[%s427 + $0x50] sm:$0xff]
        %v439 = vld [vmem:[%s427 + $0x58] sm:$0xff]
        %v440 = vld [vmem:[%s427 + $0x60] sm:$0xff]
        %v441 = vld [vmem:[%s427 + $0x68] sm:$0xff]
        %v442 = vld [vmem:[%s427 + $0x70] sm:$0xff]
        %v443 = vld [vmem:[%s427 + $0x78] sm:$0xff]
        %v444 = vld [vmem:[%s427 + $0x80] sm:$0xff]
        %v445 = vld [vmem:[%s427 + $0x88] sm:$0xff]
        %v446 = vld [vmem:[%s427 + $0x90] sm:$0xff]
        %v447 = vld [vmem:[%s427 + $0x98] sm:$0xff]
        %v448 = vld [vmem:[%s427 + $0xa0] sm:$0xff]
        %v449 = vld [vmem:[%s427 + $0xa8] sm:$0xff]
        %v450 = vld [vmem:[%s427 + $0xb0] sm:$0xff]
        %v451 = vld [vmem:[%s427 + $0xb8] sm:$0xff]
        %v452 = vld [vmem:[%s427 + $0xc0] sm:$0xff]
        %v453 = vld [vmem:[%s427 + $0xc8] sm:$0xff]
        %v454 = vld [vmem:[%s427 + $0xd0] sm:$0xff]
        %v455 = vld [vmem:[%s427 + $0xd8] sm:$0xff]
        %v456 = vld [vmem:[%s427 + $0xe0] sm:$0xff]
        %v457 = vld [vmem:[%s427 + $0xe8] sm:$0xff]
        %v458 = vld [vmem:[%s427 + $0xf0] sm:$0xff]
        %v459 = vld [vmem:[%s427 + $0xf8] sm:$0xff]
        %v462 = vrot.slane %v321, 1
        %v463 = vrot.slane %v322, 1
        %466 = vmatprep.subr.mxu0 0.0
        %467 = vmatpush1.msra.mxu0 %v428
        %468 = vmatprep.subr.mxu0 0.0
        %469 = vmatpush1.msra.mxu0 %v429
        %470 = vmatprep.subr.mxu0 0.0
        %471 = vmatpush1.msra.mxu0 %v430
        %472 = vmatprep.subr.mxu0 0.0
        %473 = vmatpush1.msra.mxu0 %v431
        %474 = vmatprep.subr.mxu0 0.0
        %475 = vmatpush1.msra.mxu0 %v432
        %476 = vmatprep.subr.mxu0 0.0
        %477 = vmatpush1.msra.mxu0 %v433
        %478 = vmatprep.subr.mxu0 0.0
        %479 = vmatpush1.msra.mxu0 %v434
        %480 = vmatprep.subr.mxu0 0.0
        %481 = vmatpush1.msra.mxu0 %v435
        %482 = vmatprep.subr.mxu0 0.0
        %483 = vmatpush1.msra.mxu0 %v436
        %484 = vmatprep.subr.mxu0 0.0
        %485 = vmatpush1.msra.mxu0 %v437
        %486 = vmatprep.subr.mxu0 0.0
        %487 = vmatpush1.msra.mxu0 %v438
        %488 = vmatprep.subr.mxu0 0.0
        %489 = vmatpush1.msra.mxu0 %v439
        %490 = vmatprep.subr.mxu0 0.0
        %491 = vmatpush1.msra.mxu0 %v440
        %492 = vmatprep.subr.mxu0 0.0
        %493 = vmatpush1.msra.mxu0 %v441
        %494 = vmatprep.subr.mxu0 0.0
        %495 = vmatpush1.msra.mxu0 %v442
        %496 = vmatprep.subr.mxu0 0.0
        %497 = vmatpush1.msra.mxu0 %v443
        %498 = vmatprep.subr.mxu0 0.0
        %499 = vmatpush1.msra.mxu0 %v444
        %500 = vmatprep.subr.mxu0 0.0
        %501 = vmatpush1.msra.mxu0 %v445
        %502 = vmatprep.subr.mxu0 0.0
        %503 = vmatpush1.msra.mxu0 %v446
        %504 = vmatprep.subr.mxu0 0.0
        %505 = vmatpush1.msra.mxu0 %v447
        %506 = vmatprep.subr.mxu0 0.0
        %507 = vmatpush1.msra.mxu0 %v448
        %508 = vmatprep.subr.mxu0 0.0
        %509 = vmatpush1.msra.mxu0 %v449
        %510 = vmatprep.subr.mxu0 0.0
        %511 = vmatpush1.msra.mxu0 %v450
        %512 = vmatprep.subr.mxu0 0.0
        %513 = vmatpush1.msra.mxu0 %v451
        %514 = vmatprep.subr.mxu0 0.0
        %515 = vmatpush1.msra.mxu0 %v452
        %516 = vmatprep.subr.mxu0 0.0
        %517 = vmatpush1.msra.mxu0 %v453
        %518 = vmatprep.subr.mxu0 0.0
        %519 = vmatpush1.msra.mxu0 %v454
        %520 = vmatprep.subr.mxu0 0.0
        %521 = vmatpush1.msra.mxu0 %v455
        %522 = vmatprep.subr.mxu0 0.0
        %523 = vmatpush1.msra.mxu0 %v456
        %524 = vmatprep.subr.mxu0 0.0
        %525 = vmatpush1.msra.mxu0 %v457
        %526 = vmatprep.subr.mxu0 0.0
        %527 = vmatpush1.msra.mxu0 %v458
        %528 = vmatprep.subr.mxu0 0.0
        %529 = vmatpush1.msra.mxu0 %v459
        %530 = vmatprep.mubr.f32.mxu0 %v463
        %531 = vmatmul.mubr.f32.gmra.mrb[0].mxu0 %v462
        %v532 = vpop.f32.mrb[0].mxu0
        %v533 = vadd.f32 0.0, %v532
        %v534 = vpop.f32.mrb[0].mxu0
        %535 = vdwg.mxu0
        %v536 = vadd.f32 %v426, %v533
        %s537 = scalar_lea.vmem %s3, 512
        %v538 = vld [vmem:[%s537] sm:$0xff]
        %v539 = vld [vmem:[%s537 + $0x8] sm:$0xff]
        %v540 = vld [vmem:[%s537 + $0x10] sm:$0xff]
        %v541 = vld [vmem:[%s537 + $0x18] sm:$0xff]
        %v542 = vld [vmem:[%s537 + $0x20] sm:$0xff]
        %v543 = vld [vmem:[%s537 + $0x28] sm:$0xff]
        %v544 = vld [vmem:[%s537 + $0x30] sm:$0xff]
        %v545 = vld [vmem:[%s537 + $0x38] sm:$0xff]
        %v546 = vld [vmem:[%s537 + $0x40] sm:$0xff]
        %v547 = vld [vmem:[%s537 + $0x48] sm:$0xff]
        %v548 = vld [vmem:[%s537 + $0x50] sm:$0xff]
        %v549 = vld [vmem:[%s537 + $0x58] sm:$0xff]
        %v550 = vld [vmem:[%s537 + $0x60] sm:$0xff]
        %v551 = vld [vmem:[%s537 + $0x68] sm:$0xff]
        %v552 = vld [vmem:[%s537 + $0x70] sm:$0xff]
        %v553 = vld [vmem:[%s537 + $0x78] sm:$0xff]
        %v554 = vld [vmem:[%s537 + $0x80] sm:$0xff]
        %v555 = vld [vmem:[%s537 + $0x88] sm:$0xff]
        %v556 = vld [vmem:[%s537 + $0x90] sm:$0xff]
        %v557 = vld [vmem:[%s537 + $0x98] sm:$0xff]
        %v558 = vld [vmem:[%s537 + $0xa0] sm:$0xff]
        %v559 = vld [vmem:[%s537 + $0xa8] sm:$0xff]
        %v560 = vld [vmem:[%s537 + $0xb0] sm:$0xff]
        %v561 = vld [vmem:[%s537 + $0xb8] sm:$0xff]
        %v562 = vld [vmem:[%s537 + $0xc0] sm:$0xff]
        %v563 = vld [vmem:[%s537 + $0xc8] sm:$0xff]
        %v564 = vld [vmem:[%s537 + $0xd0] sm:$0xff]
        %v565 = vld [vmem:[%s537 + $0xd8] sm:$0xff]
        %v566 = vld [vmem:[%s537 + $0xe0] sm:$0xff]
        %v567 = vld [vmem:[%s537 + $0xe8] sm:$0xff]
        %v568 = vld [vmem:[%s537 + $0xf0] sm:$0xff]
        %v569 = vld [vmem:[%s537 + $0xf8] sm:$0xff]
        %v570 = vrot.slane %v321, 2
        %v571 = vrot.slane %v322, 2
        %574 = vmatprep.subr.mxu0 0.0
        %575 = vmatpush1.msra.mxu0 %v538
        %576 = vmatprep.subr.mxu0 0.0
        %577 = vmatpush1.msra.mxu0 %v539
        %578 = vmatprep.subr.mxu0 0.0
        %579 = vmatpush1.msra.mxu0 %v540
        %580 = vmatprep.subr.mxu0 0.0
        %581 = vmatpush1.msra.mxu0 %v541
        %582 = vmatprep.subr.mxu0 0.0
        %583 = vmatpush1.msra.mxu0 %v542
        %584 = vmatprep.subr.mxu0 0.0
        %585 = vmatpush1.msra.mxu0 %v543
        %586 = vmatprep.subr.mxu0 0.0
        %587 = vmatpush1.msra.mxu0 %v544
        %588 = vmatprep.subr.mxu0 0.0
        %589 = vmatpush1.msra.mxu0 %v545
        %590 = vmatprep.subr.mxu0 0.0
        %591 = vmatpush1.msra.mxu0 %v546
        %592 = vmatprep.subr.mxu0 0.0
        %593 = vmatpush1.msra.mxu0 %v547
        %594 = vmatprep.subr.mxu0 0.0
        %595 = vmatpush1.msra.mxu0 %v548
        %596 = vmatprep.subr.mxu0 0.0
        %597 = vmatpush1.msra.mxu0 %v549
        %598 = vmatprep.subr.mxu0 0.0
        %599 = vmatpush1.msra.mxu0 %v550
        %600 = vmatprep.subr.mxu0 0.0
        %601 = vmatpush1.msra.mxu0 %v551
        %602 = vmatprep.subr.mxu0 0.0
        %603 = vmatpush1.msra.mxu0 %v552
        %604 = vmatprep.subr.mxu0 0.0
        %605 = vmatpush1.msra.mxu0 %v553
        %606 = vmatprep.subr.mxu0 0.0
        %607 = vmatpush1.msra.mxu0 %v554
        %608 = vmatprep.subr.mxu0 0.0
        %609 = vmatpush1.msra.mxu0 %v555
        %610 = vmatprep.subr.mxu0 0.0
        %611 = vmatpush1.msra.mxu0 %v556
        %612 = vmatprep.subr.mxu0 0.0
        %613 = vmatpush1.msra.mxu0 %v557
        %614 = vmatprep.subr.mxu0 0.0
        %615 = vmatpush1.msra.mxu0 %v558
        %616 = vmatprep.subr.mxu0 0.0
        %617 = vmatpush1.msra.mxu0 %v559
        %618 = vmatprep.subr.mxu0 0.0
        %619 = vmatpush1.msra.mxu0 %v560
        %620 = vmatprep.subr.mxu0 0.0
        %621 = vmatpush1.msra.mxu0 %v561
        %622 = vmatprep.subr.mxu0 0.0
        %623 = vmatpush1.msra.mxu0 %v562
        %624 = vmatprep.subr.mxu0 0.0
        %625 = vmatpush1.msra.mxu0 %v563
        %626 = vmatprep.subr.mxu0 0.0
        %627 = vmatpush1.msra.mxu0 %v564
        %628 = vmatprep.subr.mxu0 0.0
        %629 = vmatpush1.msra.mxu0 %v565
        %630 = vmatprep.subr.mxu0 0.0
        %631 = vmatpush1.msra.mxu0 %v566
        %632 = vmatprep.subr.mxu0 0.0
        %633 = vmatpush1.msra.mxu0 %v567
        %634 = vmatprep.subr.mxu0 0.0
        %635 = vmatpush1.msra.mxu0 %v568
        %636 = vmatprep.subr.mxu0 0.0
        %637 = vmatpush1.msra.mxu0 %v569
        %638 = vmatprep.mubr.f32.mxu0 %v571
        %639 = vmatmul.mubr.f32.gmra.mrb[0].mxu0 %v570
        %v640 = vpop.f32.mrb[0].mxu0
        %v641 = vadd.f32 0.0, %v640
        %v642 = vpop.f32.mrb[0].mxu0
        %643 = vdwg.mxu0
        %v644 = vadd.f32 %v536, %v641
        %s645 = scalar_lea.vmem %s3, 768
        %v646 = vld [vmem:[%s645] sm:$0xff]
        %v647 = vld [vmem:[%s645 + $0x8] sm:$0xff]
        %v648 = vld [vmem:[%s645 + $0x10] sm:$0xff]
        %v649 = vld [vmem:[%s645 + $0x18] sm:$0xff]
        %v650 = vld [vmem:[%s645 + $0x20] sm:$0xff]
        %v651 = vld [vmem:[%s645 + $0x28] sm:$0xff]
        %v652 = vld [vmem:[%s645 + $0x30] sm:$0xff]
        %v653 = vld [vmem:[%s645 + $0x38] sm:$0xff]
        %v654 = vld [vmem:[%s645 + $0x40] sm:$0xff]
        %v655 = vld [vmem:[%s645 + $0x48] sm:$0xff]
        %v656 = vld [vmem:[%s645 + $0x50] sm:$0xff]
        %v657 = vld [vmem:[%s645 + $0x58] sm:$0xff]
        %v658 = vld [vmem:[%s645 + $0x60] sm:$0xff]
        %v659 = vld [vmem:[%s645 + $0x68] sm:$0xff]
        %v660 = vld [vmem:[%s645 + $0x70] sm:$0xff]
        %v661 = vld [vmem:[%s645 + $0x78] sm:$0xff]
        %v662 = vld [vmem:[%s645 + $0x80] sm:$0xff]
        %v663 = vld [vmem:[%s645 + $0x88] sm:$0xff]
        %v664 = vld [vmem:[%s645 + $0x90] sm:$0xff]
        %v665 = vld [vmem:[%s645 + $0x98] sm:$0xff]
        %v666 = vld [vmem:[%s645 + $0xa0] sm:$0xff]
        %v667 = vld [vmem:[%s645 + $0xa8] sm:$0xff]
        %v668 = vld [vmem:[%s645 + $0xb0] sm:$0xff]
        %v669 = vld [vmem:[%s645 + $0xb8] sm:$0xff]
        %v670 = vld [vmem:[%s645 + $0xc0] sm:$0xff]
        %v671 = vld [vmem:[%s645 + $0xc8] sm:$0xff]
        %v672 = vld [vmem:[%s645 + $0xd0] sm:$0xff]
        %v673 = vld [vmem:[%s645 + $0xd8] sm:$0xff]
        %v674 = vld [vmem:[%s645 + $0xe0] sm:$0xff]
        %v675 = vld [vmem:[%s645 + $0xe8] sm:$0xff]
        %v676 = vld [vmem:[%s645 + $0xf0] sm:$0xff]
        %v677 = vld [vmem:[%s645 + $0xf8] sm:$0xff]
        %v678 = vrot.slane %v321, 3
        %v679 = vrot.slane %v322, 3
        %682 = vmatprep.subr.mxu0 0.0
        %683 = vmatpush1.msra.mxu0 %v646
        %684 = vmatprep.subr.mxu0 0.0
        %685 = vmatpush1.msra.mxu0 %v647
        %686 = vmatprep.subr.mxu0 0.0
        %687 = vmatpush1.msra.mxu0 %v648
        %688 = vmatprep.subr.mxu0 0.0
        %689 = vmatpush1.msra.mxu0 %v649
        %690 = vmatprep.subr.mxu0 0.0
        %691 = vmatpush1.msra.mxu0 %v650
        %692 = vmatprep.subr.mxu0 0.0
        %693 = vmatpush1.msra.mxu0 %v651
        %694 = vmatprep.subr.mxu0 0.0
        %695 = vmatpush1.msra.mxu0 %v652
        %696 = vmatprep.subr.mxu0 0.0
        %697 = vmatpush1.msra.mxu0 %v653
        %698 = vmatprep.subr.mxu0 0.0
        %699 = vmatpush1.msra.mxu0 %v654
        %700 = vmatprep.subr.mxu0 0.0
        %701 = vmatpush1.msra.mxu0 %v655
        %702 = vmatprep.subr.mxu0 0.0
        %703 = vmatpush1.msra.mxu0 %v656
        %704 = vmatprep.subr.mxu0 0.0
        %705 = vmatpush1.msra.mxu0 %v657
        %706 = vmatprep.subr.mxu0 0.0
        %707 = vmatpush1.msra.mxu0 %v658
        %708 = vmatprep.subr.mxu0 0.0
        %709 = vmatpush1.msra.mxu0 %v659
        %710 = vmatprep.subr.mxu0 0.0
        %711 = vmatpush1.msra.mxu0 %v660
        %712 = vmatprep.subr.mxu0 0.0
        %713 = vmatpush1.msra.mxu0 %v661
        %714 = vmatprep.subr.mxu0 0.0
        %715 = vmatpush1.msra.mxu0 %v662
        %716 = vmatprep.subr.mxu0 0.0
        %717 = vmatpush1.msra.mxu0 %v663
        %718 = vmatprep.subr.mxu0 0.0
        %719 = vmatpush1.msra.mxu0 %v664
        %720 = vmatprep.subr.mxu0 0.0
        %721 = vmatpush1.msra.mxu0 %v665
        %722 = vmatprep.subr.mxu0 0.0
        %723 = vmatpush1.msra.mxu0 %v666
        %724 = vmatprep.subr.mxu0 0.0
        %725 = vmatpush1.msra.mxu0 %v667
        %726 = vmatprep.subr.mxu0 0.0
        %727 = vmatpush1.msra.mxu0 %v668
        %728 = vmatprep.subr.mxu0 0.0
        %729 = vmatpush1.msra.mxu0 %v669
        %730 = vmatprep.subr.mxu0 0.0
        %731 = vmatpush1.msra.mxu0 %v670
        %732 = vmatprep.subr.mxu0 0.0
        %733 = vmatpush1.msra.mxu0 %v671
        %734 = vmatprep.subr.mxu0 0.0
        %735 = vmatpush1.msra.mxu0 %v672
        %736 = vmatprep.subr.mxu0 0.0
        %737 = vmatpush1.msra.mxu0 %v673
        %738 = vmatprep.subr.mxu0 0.0
        %739 = vmatpush1.msra.mxu0 %v674
        %740 = vmatprep.subr.mxu0 0.0
        %741 = vmatpush1.msra.mxu0 %v675
        %742 = vmatprep.subr.mxu0 0.0
        %743 = vmatpush1.msra.mxu0 %v676
        %744 = vmatprep.subr.mxu0 0.0
        %745 = vmatpush1.msra.mxu0 %v677
        %746 = vmatprep.mubr.f32.mxu0 %v679
        %747 = vmatmul.mubr.f32.gmra.mrb[0].mxu0 %v678
        %v748 = vpop.f32.mrb[0].mxu0
        %v749 = vadd.f32 0.0, %v748
        %v750 = vpop.f32.mrb[0].mxu0
        %751 = vdwg.mxu0
        %v752 = vadd.f32 %v644, %v749
        %s753 = scalar_lea.vmem %s3, 1024
        %v754 = vld [vmem:[%s753] sm:$0xff]
        %v755 = vld [vmem:[%s753 + $0x8] sm:$0xff]
        %v756 = vld [vmem:[%s753 + $0x10] sm:$0xff]
        %v757 = vld [vmem:[%s753 + $0x18] sm:$0xff]
        %v758 = vld [vmem:[%s753 + $0x20] sm:$0xff]
        %v759 = vld [vmem:[%s753 + $0x28] sm:$0xff]
        %v760 = vld [vmem:[%s753 + $0x30] sm:$0xff]
        %v761 = vld [vmem:[%s753 + $0x38] sm:$0xff]
        %v762 = vld [vmem:[%s753 + $0x40] sm:$0xff]
        %v763 = vld [vmem:[%s753 + $0x48] sm:$0xff]
        %v764 = vld [vmem:[%s753 + $0x50] sm:$0xff]
        %v765 = vld [vmem:[%s753 + $0x58] sm:$0xff]
        %v766 = vld [vmem:[%s753 + $0x60] sm:$0xff]
        %v767 = vld [vmem:[%s753 + $0x68] sm:$0xff]
        %v768 = vld [vmem:[%s753 + $0x70] sm:$0xff]
        %v769 = vld [vmem:[%s753 + $0x78] sm:$0xff]
        %v770 = vld [vmem:[%s753 + $0x80] sm:$0xff]
        %v771 = vld [vmem:[%s753 + $0x88] sm:$0xff]
        %v772 = vld [vmem:[%s753 + $0x90] sm:$0xff]
        %v773 = vld [vmem:[%s753 + $0x98] sm:$0xff]
        %v774 = vld [vmem:[%s753 + $0xa0] sm:$0xff]
        %v775 = vld [vmem:[%s753 + $0xa8] sm:$0xff]
        %v776 = vld [vmem:[%s753 + $0xb0] sm:$0xff]
        %v777 = vld [vmem:[%s753 + $0xb8] sm:$0xff]
        %v778 = vld [vmem:[%s753 + $0xc0] sm:$0xff]
        %v779 = vld [vmem:[%s753 + $0xc8] sm:$0xff]
        %v780 = vld [vmem:[%s753 + $0xd0] sm:$0xff]
        %v781 = vld [vmem:[%s753 + $0xd8] sm:$0xff]
        %v782 = vld [vmem:[%s753 + $0xe0] sm:$0xff]
        %v783 = vld [vmem:[%s753 + $0xe8] sm:$0xff]
        %v784 = vld [vmem:[%s753 + $0xf0] sm:$0xff]
        %v785 = vld [vmem:[%s753 + $0xf8] sm:$0xff]
        %v786 = vrot.slane %v321, 4
        %v787 = vrot.slane %v322, 4
        %790 = vmatprep.subr.mxu0 0.0
        %791 = vmatpush1.msra.mxu0 %v754
        %792 = vmatprep.subr.mxu0 0.0
        %793 = vmatpush1.msra.mxu0 %v755
        %794 = vmatprep.subr.mxu0 0.0
        %795 = vmatpush1.msra.mxu0 %v756
        %796 = vmatprep.subr.mxu0 0.0
        %797 = vmatpush1.msra.mxu0 %v757
        %798 = vmatprep.subr.mxu0 0.0
        %799 = vmatpush1.msra.mxu0 %v758
        %800 = vmatprep.subr.mxu0 0.0
        %801 = vmatpush1.msra.mxu0 %v759
        %802 = vmatprep.subr.mxu0 0.0
        %803 = vmatpush1.msra.mxu0 %v760
        %804 = vmatprep.subr.mxu0 0.0
        %805 = vmatpush1.msra.mxu0 %v761
        %806 = vmatprep.subr.mxu0 0.0
        %807 = vmatpush1.msra.mxu0 %v762
        %808 = vmatprep.subr.mxu0 0.0
        %809 = vmatpush1.msra.mxu0 %v763
        %810 = vmatprep.subr.mxu0 0.0
        %811 = vmatpush1.msra.mxu0 %v764
        %812 = vmatprep.subr.mxu0 0.0
        %813 = vmatpush1.msra.mxu0 %v765
        %814 = vmatprep.subr.mxu0 0.0
        %815 = vmatpush1.msra.mxu0 %v766
        %816 = vmatprep.subr.mxu0 0.0
        %817 = vmatpush1.msra.mxu0 %v767
        %818 = vmatprep.subr.mxu0 0.0
        %819 = vmatpush1.msra.mxu0 %v768
        %820 = vmatprep.subr.mxu0 0.0
        %821 = vmatpush1.msra.mxu0 %v769
        %822 = vmatprep.subr.mxu0 0.0
        %823 = vmatpush1.msra.mxu0 %v770
        %824 = vmatprep.subr.mxu0 0.0
        %825 = vmatpush1.msra.mxu0 %v771
        %826 = vmatprep.subr.mxu0 0.0
        %827 = vmatpush1.msra.mxu0 %v772
        %828 = vmatprep.subr.mxu0 0.0
        %829 = vmatpush1.msra.mxu0 %v773
        %830 = vmatprep.subr.mxu0 0.0
        %831 = vmatpush1.msra.mxu0 %v774
        %832 = vmatprep.subr.mxu0 0.0
        %833 = vmatpush1.msra.mxu0 %v775
        %834 = vmatprep.subr.mxu0 0.0
        %835 = vmatpush1.msra.mxu0 %v776
        %836 = vmatprep.subr.mxu0 0.0
        %837 = vmatpush1.msra.mxu0 %v777
        %838 = vmatprep.subr.mxu0 0.0
        %839 = vmatpush1.msra.mxu0 %v778
        %840 = vmatprep.subr.mxu0 0.0
        %841 = vmatpush1.msra.mxu0 %v779
        %842 = vmatprep.subr.mxu0 0.0
        %843 = vmatpush1.msra.mxu0 %v780
        %844 = vmatprep.subr.mxu0 0.0
        %845 = vmatpush1.msra.mxu0 %v781
        %846 = vmatprep.subr.mxu0 0.0
        %847 = vmatpush1.msra.mxu0 %v782
        %848 = vmatprep.subr.mxu0 0.0
        %849 = vmatpush1.msra.mxu0 %v783
        %850 = vmatprep.subr.mxu0 0.0
        %851 = vmatpush1.msra.mxu0 %v784
        %852 = vmatprep.subr.mxu0 0.0
        %853 = vmatpush1.msra.mxu0 %v785
        %854 = vmatprep.mubr.f32.mxu0 %v787
        %855 = vmatmul.mubr.f32.gmra.mrb[0].mxu0 %v786
        %v856 = vpop.f32.mrb[0].mxu0
        %v857 = vadd.f32 0.0, %v856
        %v858 = vpop.f32.mrb[0].mxu0
        %859 = vdwg.mxu0
        %v860 = vadd.f32 %v752, %v857
        %s861 = scalar_lea.vmem %s3, 1280
        %v862 = vld [vmem:[%s861] sm:$0xff]
        %v863 = vld [vmem:[%s861 + $0x8] sm:$0xff]
        %v864 = vld [vmem:[%s861 + $0x10] sm:$0xff]
        %v865 = vld [vmem:[%s861 + $0x18] sm:$0xff]
        %v866 = vld [vmem:[%s861 + $0x20] sm:$0xff]
        %v867 = vld [vmem:[%s861 + $0x28] sm:$0xff]
        %v868 = vld [vmem:[%s861 + $0x30] sm:$0xff]
        %v869 = vld [vmem:[%s861 + $0x38] sm:$0xff]
        %v870 = vld [vmem:[%s861 + $0x40] sm:$0xff]
        %v871 = vld [vmem:[%s861 + $0x48] sm:$0xff]
        %v872 = vld [vmem:[%s861 + $0x50] sm:$0xff]
        %v873 = vld [vmem:[%s861 + $0x58] sm:$0xff]
        %v874 = vld [vmem:[%s861 + $0x60] sm:$0xff]
        %v875 = vld [vmem:[%s861 + $0x68] sm:$0xff]
        %v876 = vld [vmem:[%s861 + $0x70] sm:$0xff]
        %v877 = vld [vmem:[%s861 + $0x78] sm:$0xff]
        %v878 = vld [vmem:[%s861 + $0x80] sm:$0xff]
        %v879 = vld [vmem:[%s861 + $0x88] sm:$0xff]
        %v880 = vld [vmem:[%s861 + $0x90] sm:$0xff]
        %v881 = vld [vmem:[%s861 + $0x98] sm:$0xff]
        %v882 = vld [vmem:[%s861 + $0xa0] sm:$0xff]
        %v883 = vld [vmem:[%s861 + $0xa8] sm:$0xff]
        %v884 = vld [vmem:[%s861 + $0xb0] sm:$0xff]
        %v885 = vld [vmem:[%s861 + $0xb8] sm:$0xff]
        %v886 = vld [vmem:[%s861 + $0xc0] sm:$0xff]
        %v887 = vld [vmem:[%s861 + $0xc8] sm:$0xff]
        %v888 = vld [vmem:[%s861 + $0xd0] sm:$0xff]
        %v889 = vld [vmem:[%s861 + $0xd8] sm:$0xff]
        %v890 = vld [vmem:[%s861 + $0xe0] sm:$0xff]
        %v891 = vld [vmem:[%s861 + $0xe8] sm:$0xff]
        %v892 = vld [vmem:[%s861 + $0xf0] sm:$0xff]
        %v893 = vld [vmem:[%s861 + $0xf8] sm:$0xff]
        %v894 = vrot.slane %v321, 5
        %v895 = vrot.slane %v322, 5
        %898 = vmatprep.subr.mxu0 0.0
        %899 = vmatpush1.msra.mxu0 %v862
        %900 = vmatprep.subr.mxu0 0.0
        %901 = vmatpush1.msra.mxu0 %v863
        %902 = vmatprep.subr.mxu0 0.0
        %903 = vmatpush1.msra.mxu0 %v864
        %904 = vmatprep.subr.mxu0 0.0
        %905 = vmatpush1.msra.mxu0 %v865
        %906 = vmatprep.subr.mxu0 0.0
        %907 = vmatpush1.msra.mxu0 %v866
        %908 = vmatprep.subr.mxu0 0.0
        %909 = vmatpush1.msra.mxu0 %v867
        %910 = vmatprep.subr.mxu0 0.0
        %911 = vmatpush1.msra.mxu0 %v868
        %912 = vmatprep.subr.mxu0 0.0
        %913 = vmatpush1.msra.mxu0 %v869
        %914 = vmatprep.subr.mxu0 0.0
        %915 = vmatpush1.msra.mxu0 %v870
        %916 = vmatprep.subr.mxu0 0.0
        %917 = vmatpush1.msra.mxu0 %v871
        %918 = vmatprep.subr.mxu0 0.0
        %919 = vmatpush1.msra.mxu0 %v872
        %920 = vmatprep.subr.mxu0 0.0
        %921 = vmatpush1.msra.mxu0 %v873
        %922 = vmatprep.subr.mxu0 0.0
        %923 = vmatpush1.msra.mxu0 %v874
        %924 = vmatprep.subr.mxu0 0.0
        %925 = vmatpush1.msra.mxu0 %v875
        %926 = vmatprep.subr.mxu0 0.0
        %927 = vmatpush1.msra.mxu0 %v876
        %928 = vmatprep.subr.mxu0 0.0
        %929 = vmatpush1.msra.mxu0 %v877
        %930 = vmatprep.subr.mxu0 0.0
        %931 = vmatpush1.msra.mxu0 %v878
        %932 = vmatprep.subr.mxu0 0.0
        %933 = vmatpush1.msra.mxu0 %v879
        %934 = vmatprep.subr.mxu0 0.0
        %935 = vmatpush1.msra.mxu0 %v880
        %936 = vmatprep.subr.mxu0 0.0
        %937 = vmatpush1.msra.mxu0 %v881
        %938 = vmatprep.subr.mxu0 0.0
        %939 = vmatpush1.msra.mxu0 %v882
        %940 = vmatprep.subr.mxu0 0.0
        %941 = vmatpush1.msra.mxu0 %v883
        %942 = vmatprep.subr.mxu0 0.0
        %943 = vmatpush1.msra.mxu0 %v884
        %944 = vmatprep.subr.mxu0 0.0
        %945 = vmatpush1.msra.mxu0 %v885
        %946 = vmatprep.subr.mxu0 0.0
        %947 = vmatpush1.msra.mxu0 %v886
        %948 = vmatprep.subr.mxu0 0.0
        %949 = vmatpush1.msra.mxu0 %v887
        %950 = vmatprep.subr.mxu0 0.0
        %951 = vmatpush1.msra.mxu0 %v888
        %952 = vmatprep.subr.mxu0 0.0
        %953 = vmatpush1.msra.mxu0 %v889
        %954 = vmatprep.subr.mxu0 0.0
        %955 = vmatpush1.msra.mxu0 %v890
        %956 = vmatprep.subr.mxu0 0.0
        %957 = vmatpush1.msra.mxu0 %v891
        %958 = vmatprep.subr.mxu0 0.0
        %959 = vmatpush1.msra.mxu0 %v892
        %960 = vmatprep.subr.mxu0 0.0
        %961 = vmatpush1.msra.mxu0 %v893
        %962 = vmatprep.mubr.f32.mxu0 %v895
        %963 = vmatmul.mubr.f32.gmra.mrb[0].mxu0 %v894
        %v964 = vpop.f32.mrb[0].mxu0
        %v965 = vadd.f32 0.0, %v964
        %v966 = vpop.f32.mrb[0].mxu0
        %967 = vdwg.mxu0
        %v968 = vadd.f32 %v860, %v965
        %s969 = scalar_lea.vmem %s3, 1536
        %v970 = vld [vmem:[%s969] sm:$0xff]
        %v971 = vld [vmem:[%s969 + $0x8] sm:$0xff]
        %v972 = vld [vmem:[%s969 + $0x10] sm:$0xff]
        %v973 = vld [vmem:[%s969 + $0x18] sm:$0xff]
        %v974 = vld [vmem:[%s969 + $0x20] sm:$0xff]
        %v975 = vld [vmem:[%s969 + $0x28] sm:$0xff]
        %v976 = vld [vmem:[%s969 + $0x30] sm:$0xff]
        %v977 = vld [vmem:[%s969 + $0x38] sm:$0xff]
        %v978 = vld [vmem:[%s969 + $0x40] sm:$0xff]
        %v979 = vld [vmem:[%s969 + $0x48] sm:$0xff]
        %v980 = vld [vmem:[%s969 + $0x50] sm:$0xff]
        %v981 = vld [vmem:[%s969 + $0x58] sm:$0xff]
        %v982 = vld [vmem:[%s969 + $0x60] sm:$0xff]
        %v983 = vld [vmem:[%s969 + $0x68] sm:$0xff]
        %v984 = vld [vmem:[%s969 + $0x70] sm:$0xff]
        %v985 = vld [vmem:[%s969 + $0x78] sm:$0xff]
        %v986 = vld [vmem:[%s969 + $0x80] sm:$0xff]
        %v987 = vld [vmem:[%s969 + $0x88] sm:$0xff]
        %v988 = vld [vmem:[%s969 + $0x90] sm:$0xff]
        %v989 = vld [vmem:[%s969 + $0x98] sm:$0xff]
        %v990 = vld [vmem:[%s969 + $0xa0] sm:$0xff]
        %v991 = vld [vmem:[%s969 + $0xa8] sm:$0xff]
        %v992 = vld [vmem:[%s969 + $0xb0] sm:$0xff]
        %v993 = vld [vmem:[%s969 + $0xb8] sm:$0xff]
        %v994 = vld [vmem:[%s969 + $0xc0] sm:$0xff]
        %v995 = vld [vmem:[%s969 + $0xc8] sm:$0xff]
        %v996 = vld [vmem:[%s969 + $0xd0] sm:$0xff]
        %v997 = vld [vmem:[%s969 + $0xd8] sm:$0xff]
        %v998 = vld [vmem:[%s969 + $0xe0] sm:$0xff]
        %v999 = vld [vmem:[%s969 + $0xe8] sm:$0xff]
        %v1000 = vld [vmem:[%s969 + $0xf0] sm:$0xff]
        %v1001 = vld [vmem:[%s969 + $0xf8] sm:$0xff]
        %v1002 = vrot.slane %v321, 6
        %v1003 = vrot.slane %v322, 6
        %1006 = vmatprep.subr.mxu0 0.0
        %1007 = vmatpush1.msra.mxu0 %v970
        %1008 = vmatprep.subr.mxu0 0.0
        %1009 = vmatpush1.msra.mxu0 %v971
        %1010 = vmatprep.subr.mxu0 0.0
        %1011 = vmatpush1.msra.mxu0 %v972
        %1012 = vmatprep.subr.mxu0 0.0
        %1013 = vmatpush1.msra.mxu0 %v973
        %1014 = vmatprep.subr.mxu0 0.0
        %1015 = vmatpush1.msra.mxu0 %v974
        %1016 = vmatprep.subr.mxu0 0.0
        %1017 = vmatpush1.msra.mxu0 %v975
        %1018 = vmatprep.subr.mxu0 0.0
        %1019 = vmatpush1.msra.mxu0 %v976
        %1020 = vmatprep.subr.mxu0 0.0
        %1021 = vmatpush1.msra.mxu0 %v977
        %1022 = vmatprep.subr.mxu0 0.0
        %1023 = vmatpush1.msra.mxu0 %v978
        %1024 = vmatprep.subr.mxu0 0.0
        %1025 = vmatpush1.msra.mxu0 %v979
        %1026 = vmatprep.subr.mxu0 0.0
        %1027 = vmatpush1.msra.mxu0 %v980
        %1028 = vmatprep.subr.mxu0 0.0
        %1029 = vmatpush1.msra.mxu0 %v981
        %1030 = vmatprep.subr.mxu0 0.0
        %1031 = vmatpush1.msra.mxu0 %v982
        %1032 = vmatprep.subr.mxu0 0.0
        %1033 = vmatpush1.msra.mxu0 %v983
        %1034 = vmatprep.subr.mxu0 0.0
        %1035 = vmatpush1.msra.mxu0 %v984
        %1036 = vmatprep.subr.mxu0 0.0
        %1037 = vmatpush1.msra.mxu0 %v985
        %1038 = vmatprep.subr.mxu0 0.0
        %1039 = vmatpush1.msra.mxu0 %v986
        %1040 = vmatprep.subr.mxu0 0.0
        %1041 = vmatpush1.msra.mxu0 %v987
        %1042 = vmatprep.subr.mxu0 0.0
        %1043 = vmatpush1.msra.mxu0 %v988
        %1044 = vmatprep.subr.mxu0 0.0
        %1045 = vmatpush1.msra.mxu0 %v989
        %1046 = vmatprep.subr.mxu0 0.0
        %1047 = vmatpush1.msra.mxu0 %v990
        %1048 = vmatprep.subr.mxu0 0.0
        %1049 = vmatpush1.msra.mxu0 %v991
        %1050 = vmatprep.subr.mxu0 0.0
        %1051 = vmatpush1.msra.mxu0 %v992
        %1052 = vmatprep.subr.mxu0 0.0
        %1053 = vmatpush1.msra.mxu0 %v993
        %1054 = vmatprep.subr.mxu0 0.0
        %1055 = vmatpush1.msra.mxu0 %v994
        %1056 = vmatprep.subr.mxu0 0.0
        %1057 = vmatpush1.msra.mxu0 %v995
        %1058 = vmatprep.subr.mxu0 0.0
        %1059 = vmatpush1.msra.mxu0 %v996
        %1060 = vmatprep.subr.mxu0 0.0
        %1061 = vmatpush1.msra.mxu0 %v997
        %1062 = vmatprep.subr.mxu0 0.0
        %1063 = vmatpush1.msra.mxu0 %v998
        %1064 = vmatprep.subr.mxu0 0.0
        %1065 = vmatpush1.msra.mxu0 %v999
        %1066 = vmatprep.subr.mxu0 0.0
        %1067 = vmatpush1.msra.mxu0 %v1000
        %1068 = vmatprep.subr.mxu0 0.0
        %1069 = vmatpush1.msra.mxu0 %v1001
        %1070 = vmatprep.mubr.f32.mxu0 %v1003
        %1071 = vmatmul.mubr.f32.gmra.mrb[0].mxu0 %v1002
        %v1072 = vpop.f32.mrb[0].mxu0
        %v1073 = vadd.f32 0.0, %v1072
        %v1074 = vpop.f32.mrb[0].mxu0
        %1075 = vdwg.mxu0
        %v1076 = vadd.f32 %v968, %v1073
        %s1077 = scalar_lea.vmem %s3, 1792
        %v1078 = vld [vmem:[%s1077] sm:$0xff]
        %v1079 = vld [vmem:[%s1077 + $0x8] sm:$0xff]
        %v1080 = vld [vmem:[%s1077 + $0x10] sm:$0xff]
        %v1081 = vld [vmem:[%s1077 + $0x18] sm:$0xff]
        %v1082 = vld [vmem:[%s1077 + $0x20] sm:$0xff]
        %v1083 = vld [vmem:[%s1077 + $0x28] sm:$0xff]
        %v1084 = vld [vmem:[%s1077 + $0x30] sm:$0xff]
        %v1085 = vld [vmem:[%s1077 + $0x38] sm:$0xff]
        %v1086 = vld [vmem:[%s1077 + $0x40] sm:$0xff]
        %v1087 = vld [vmem:[%s1077 + $0x48] sm:$0xff]
        %v1088 = vld [vmem:[%s1077 + $0x50] sm:$0xff]
        %v1089 = vld [vmem:[%s1077 + $0x58] sm:$0xff]
        %v1090 = vld [vmem:[%s1077 + $0x60] sm:$0xff]
        %v1091 = vld [vmem:[%s1077 + $0x68] sm:$0xff]
        %v1092 = vld [vmem:[%s1077 + $0x70] sm:$0xff]
        %v1093 = vld [vmem:[%s1077 + $0x78] sm:$0xff]
        %v1094 = vld [vmem:[%s1077 + $0x80] sm:$0xff]
        %v1095 = vld [vmem:[%s1077 + $0x88] sm:$0xff]
        %v1096 = vld [vmem:[%s1077 + $0x90] sm:$0xff]
        %v1097 = vld [vmem:[%s1077 + $0x98] sm:$0xff]
        %v1098 = vld [vmem:[%s1077 + $0xa0] sm:$0xff]
        %v1099 = vld [vmem:[%s1077 + $0xa8] sm:$0xff]
        %v1100 = vld [vmem:[%s1077 + $0xb0] sm:$0xff]
        %v1101 = vld [vmem:[%s1077 + $0xb8] sm:$0xff]
        %v1102 = vld [vmem:[%s1077 + $0xc0] sm:$0xff]
        %v1103 = vld [vmem:[%s1077 + $0xc8] sm:$0xff]
        %v1104 = vld [vmem:[%s1077 + $0xd0] sm:$0xff]
        %v1105 = vld [vmem:[%s1077 + $0xd8] sm:$0xff]
        %v1106 = vld [vmem:[%s1077 + $0xe0] sm:$0xff]
        %v1107 = vld [vmem:[%s1077 + $0xe8] sm:$0xff]
        %v1108 = vld [vmem:[%s1077 + $0xf0] sm:$0xff]
        %v1109 = vld [vmem:[%s1077 + $0xf8] sm:$0xff]
        %v1110 = vrot.slane %v321, 7
        %v1111 = vrot.slane %v322, 7
        %1114 = vmatprep.subr.mxu0 0.0
        %1115 = vmatpush1.msra.mxu0 %v1078
        %1116 = vmatprep.subr.mxu0 0.0
        %1117 = vmatpush1.msra.mxu0 %v1079
        %1118 = vmatprep.subr.mxu0 0.0
        %1119 = vmatpush1.msra.mxu0 %v1080
        %1120 = vmatprep.subr.mxu0 0.0
        %1121 = vmatpush1.msra.mxu0 %v1081
        %1122 = vmatprep.subr.mxu0 0.0
        %1123 = vmatpush1.msra.mxu0 %v1082
        %1124 = vmatprep.subr.mxu0 0.0
        %1125 = vmatpush1.msra.mxu0 %v1083
        %1126 = vmatprep.subr.mxu0 0.0
        %1127 = vmatpush1.msra.mxu0 %v1084
        %1128 = vmatprep.subr.mxu0 0.0
        %1129 = vmatpush1.msra.mxu0 %v1085
        %1130 = vmatprep.subr.mxu0 0.0
        %1131 = vmatpush1.msra.mxu0 %v1086
        %1132 = vmatprep.subr.mxu0 0.0
        %1133 = vmatpush1.msra.mxu0 %v1087
        %1134 = vmatprep.subr.mxu0 0.0
        %1135 = vmatpush1.msra.mxu0 %v1088
        %1136 = vmatprep.subr.mxu0 0.0
        %1137 = vmatpush1.msra.mxu0 %v1089
        %1138 = vmatprep.subr.mxu0 0.0
        %1139 = vmatpush1.msra.mxu0 %v1090
        %1140 = vmatprep.subr.mxu0 0.0
        %1141 = vmatpush1.msra.mxu0 %v1091
        %1142 = vmatprep.subr.mxu0 0.0
        %1143 = vmatpush1.msra.mxu0 %v1092
        %1144 = vmatprep.subr.mxu0 0.0
        %1145 = vmatpush1.msra.mxu0 %v1093
        %1146 = vmatprep.subr.mxu0 0.0
        %1147 = vmatpush1.msra.mxu0 %v1094
        %1148 = vmatprep.subr.mxu0 0.0
        %1149 = vmatpush1.msra.mxu0 %v1095
        %1150 = vmatprep.subr.mxu0 0.0
        %1151 = vmatpush1.msra.mxu0 %v1096
        %1152 = vmatprep.subr.mxu0 0.0
        %1153 = vmatpush1.msra.mxu0 %v1097
        %1154 = vmatprep.subr.mxu0 0.0
        %1155 = vmatpush1.msra.mxu0 %v1098
        %1156 = vmatprep.subr.mxu0 0.0
        %1157 = vmatpush1.msra.mxu0 %v1099
        %1158 = vmatprep.subr.mxu0 0.0
        %1159 = vmatpush1.msra.mxu0 %v1100
        %1160 = vmatprep.subr.mxu0 0.0
        %1161 = vmatpush1.msra.mxu0 %v1101
        %1162 = vmatprep.subr.mxu0 0.0
        %1163 = vmatpush1.msra.mxu0 %v1102
        %1164 = vmatprep.subr.mxu0 0.0
        %1165 = vmatpush1.msra.mxu0 %v1103
        %1166 = vmatprep.subr.mxu0 0.0
        %1167 = vmatpush1.msra.mxu0 %v1104
        %1168 = vmatprep.subr.mxu0 0.0
        %1169 = vmatpush1.msra.mxu0 %v1105
        %1170 = vmatprep.subr.mxu0 0.0
        %1171 = vmatpush1.msra.mxu0 %v1106
        %1172 = vmatprep.subr.mxu0 0.0
        %1173 = vmatpush1.msra.mxu0 %v1107
        %1174 = vmatprep.subr.mxu0 0.0
        %1175 = vmatpush1.msra.mxu0 %v1108
        %1176 = vmatprep.subr.mxu0 0.0
        %1177 = vmatpush1.msra.mxu0 %v1109
        %1178 = vmatprep.mubr.f32.mxu0 %v1111
        %1179 = vmatmul.mubr.f32.gmra.mrb[0].mxu0 %v1110
        %v1180 = vpop.f32.mrb[0].mxu0
        %v1181 = vadd.f32 0.0, %v1180
        %v1182 = vpop.f32.mrb[0].mxu0
        %1183 = vdwg.mxu0
        %v1184 = vadd.f32 %v1076, %v1181
        %vm1185 = vcmask 253952
        %1186 = vst.msk [vmem:[%s216] sm:$0x1] %vm1185, %v1184
        %s1187 = sand.u32 %s137, 1
        %s1188 = scalar_lea.sflag [#allocation3], %s1187
        %s1189 = sand.u32 %s137, 1
        %s1190 = scalar_lea.vmem [#allocation2], %s1189
        // Predicated region
        $region41: #{encode.1} parent=39 // pred_check
          %p1191 = pneg %p147
        $region42: #{encode.1} parent=39 // pred_check_branch
          %1193 = sbr.rel (%p1191) target = $region44
        $region43: #{encode.1} parent=39 // pred_region
          %s1195 = ssub.s32 16, 16
          %1196 = vsyncadd %s1188, %s1195
          %s1197 = smul.addr %s19, 16
          %s1198 = scalar_lea.hbm %s5, %s1197
          %s1200 = sshll.u32 %s1190, 4
          %s1201 = int_to_ptr.vmem [resolvable:$true] %s1200
          %1203 = dma.vmem_to_hbm [thread:$0]  %s1201, 16, %s1198, %s1188
        $region44: #{encode.1} parent=39 // pred_fallthru
          _
      $region40: #{encode.1} parent=5 // pred_fallthru
        _
      %p1204 = scmp.le.s32.totalorder 2, %s14
      // Predicated region
      $region45: #{encode.1} parent=5 // pred_check
        %p1205 = pneg %p1204
      $region46: #{encode.1} parent=5 // pred_check_branch
        %1207 = sbr.rel (%p1205) target = $region48
      $region47: #{encode.1} parent=5 // pred_region
        %s1208 = ssub.s32 %s14, 2
        // Predicated region
        $region49: #{encode.1} parent=47 // pred_check
          %p1209 = pneg %p153
        $region50: #{encode.1} parent=47 // pred_check_branch
          %1211 = sbr.rel (%p1209) target = $region52
        $region51: #{encode.1} parent=47 // pred_region
          %s1212 = sand.u32 %s138, 1
          %s1213 = scalar_lea.sflag [#allocation3], %s1212
          %s1214 = sand.u32 %s138, 1
          %s1215 = scalar_lea.vmem [#allocation2], %s1214
          %1216 = dma.done %s1213, 16
        $region52: #{encode.1} parent=47 // pred_fallthru
          _
      $region48: #{encode.1} parent=5 // pred_fallthru
        _
    $region6: #{encode.1} parent=1 // loop_footer
      %s18 = sadd.s32 1, %s14
    $region7: #{encode.1} parent=1 // loop_footer_branch
      %13 = sbr.rel target = $region3
    $region8: #{encode.1} parent=1 // loop_exit
      _
    %1217 = vsyncpa [#allocation3], 1
    %s1218 = scalar_lea.sflag [#allocation3], 1
    %1219 = vsyncpa %s1218, 1

</llo_original>
